<compile_context>
chip_gen: v7x
topology: tpu7x:2x2x1
jax: 0.10.0
libtpu: 0.0.40
codegen_flags: <defaults>
</compile_context>

<pallas_src>
import functools

import jax
import jax.numpy as jnp
from jax.experimental import pallas as pl
from jax.experimental.pallas import tpu as pltpu

BN_EPS = 1e-5
NORM_EPS = 1e-12  # torch F.normalize eps


def _matching_kernel(x_ref, w1_ref, b1_ref, w2_ref, b2_ref, out_ref, *, jemb_dim):
    x = x_ref[...]

    # Fused layer 1: both branches at once via block-diagonal W1 (bias/BN folded).
    h = jnp.dot(x, w1_ref[...], preferred_element_type=jnp.float32) + b1_ref[...]
    h = jnp.maximum(h, 0.0)
    # TODO(synk): Dropout omitted (inference mode -> identity).

    # Fused layer 2: block-diagonal W2, output columns = [visual_emb | lang_emb].
    e = jnp.dot(h, w2_ref[...], preferred_element_type=jnp.float32) + b2_ref[...]

    ve = e[:, :jemb_dim]
    le = e[:, jemb_dim:2 * jemb_dim]

    # cossim = <ve, le> / (max(||ve||, eps) * max(||le||, eps))
    dot = jnp.sum(ve * le, axis=1, keepdims=True)
    nv = jnp.sqrt(jnp.sum(ve * ve, axis=1, keepdims=True))
    nl = jnp.sqrt(jnp.sum(le * le, axis=1, keepdims=True))
    denom = jnp.maximum(nv, NORM_EPS) * jnp.maximum(nl, NORM_EPS)
    out_ref[...] = (dot / denom).astype(out_ref.dtype)


def _fold_bn_into_linear(w, b, gamma, beta, mean, var):
    """(x @ w + b) then eval-mode BN  ==  x @ w' + b'."""
    s = gamma / jnp.sqrt(var + BN_EPS)
    w_f = w * s[None, :]
    b_f = b * s + (beta - mean * s)
    return w_f, b_f


def _round_up(x, m):
    return (x + m - 1) // m * m


def matching_forward(visual_input, lang_input, params, *, block_m=512):
    n, vis_dim = visual_input.shape
    _, lang_dim = lang_input.shape
    jemb = params["vis_w2"].shape[1]

    # ---- fold bias + BatchNorm (eval) into the linear weights (once per weight set)
    vw1, vb1 = _fold_bn_into_linear(params["vis_w1"], params["vis_b1"], *params["vis_bn1"])
    vw2, vb2 = _fold_bn_into_linear(params["vis_w2"], params["vis_b2"], *params["vis_bn2"])
    lw1, lb1 = _fold_bn_into_linear(params["lang_w1"], params["lang_b1"], *params["lang_bn1"])
    lw2, lb2 = _fold_bn_into_linear(params["lang_w2"], params["lang_b2"], *params["lang_bn2"])

    # ---- fuse branches: padded concat input + block-diagonal weights
    vis_pad = _round_up(vis_dim, 8)
    lang_pad = _round_up(lang_dim, 8)
    d_in = vis_pad + lang_pad
    d_h = 2 * jemb

    x = jnp.concatenate(
        [
            visual_input.astype(jnp.float32),
            jnp.zeros((n, vis_pad - vis_dim), jnp.float32),
            lang_input.astype(jnp.float32),
            jnp.zeros((n, lang_pad - lang_dim), jnp.float32),
        ],
        axis=1,
    )

    w1 = jnp.zeros((d_in, d_h), jnp.float32)
    w1 = w1.at[:vis_dim, :jemb].set(vw1)
    w1 = w1.at[vis_pad:vis_pad + lang_dim, jemb:].set(lw1)
    b1 = jnp.concatenate([vb1, lb1]).reshape(1, d_h)

    w2 = jnp.zeros((d_h, d_h), jnp.float32)
    w2 = w2.at[:jemb, :jemb].set(vw2)
    w2 = w2.at[jemb:, jemb:].set(lw2)
    b2 = jnp.concatenate([vb2, lb2]).reshape(1, d_h)

    # ---- batch tile: bounded VMEM footprint, pipelined DMA; fits v7x's 64 MiB easily
    tm = max(8, min(block_m, _round_up(n, 8)))
    grid = (pl.cdiv(n, tm),)

    kernel = functools.partial(_matching_kernel, jemb_dim=jemb)
    return pl.pallas_call(
        kernel,
        out_shape=jax.ShapeDtypeStruct((n, 1), jnp.float32),
        grid=grid,
        in_specs=[
            pl.BlockSpec((tm, d_in), lambda i: (i, 0)),     # batch-tiled input
            pl.BlockSpec((d_in, d_h), lambda i: (0, 0)),    # weights pinned in VMEM
            pl.BlockSpec((1, d_h), lambda i: (0, 0)),
            pl.BlockSpec((d_h, d_h), lambda i: (0, 0)),
            pl.BlockSpec((1, d_h), lambda i: (0, 0)),
        ],
        out_specs=pl.BlockSpec((tm, 1), lambda i: (i, 0)),
        compiler_params=pltpu.CompilerParams(
            dimension_semantics=("parallel",),              # lets v7x shard across 2 TCs
        ),
    )(x, w1, b1, w2, b2)


def matching_reference(visual_input, lang_input, params):
    """Pure-JAX reference of the same inference-mode forward (torch semantics)."""
    def bn(x, gamma, beta, mean, var):
        return (x - mean) / jnp.sqrt(var + BN_EPS) * gamma + beta

    def branch(x, w1, b1, bn1, w2, b2, bn2):
        h = jnp.maximum(bn(x @ w1 + b1, *bn1), 0.0)
        return bn(h @ w2 + b2, *bn2)

    ve = branch(visual_input, params["vis_w1"], params["vis_b1"], params["vis_bn1"],
                params["vis_w2"], params["vis_b2"], params["vis_bn2"])
    le = branch(lang_input, params["lang_w1"], params["lang_b1"], params["lang_bn1"],
                params["lang_w2"], params["lang_b2"], params["lang_bn2"])
    vn = ve / jnp.maximum(jnp.linalg.norm(ve, axis=1, keepdims=True), NORM_EPS)
    ln = le / jnp.maximum(jnp.linalg.norm(le, axis=1, keepdims=True), NORM_EPS)
    return jnp.sum(vn * ln, axis=1, keepdims=True)


def make_params(key, vis_dim, lang_dim, jemb_dim):
    ks = jax.random.split(key, 16)

    def lin(kw, kb, d_in, d_out):
        bound = 1.0 / jnp.sqrt(d_in)
        w = jax.random.uniform(kw, (d_in, d_out), jnp.float32, -bound, bound)
        b = jax.random.uniform(kb, (d_out,), jnp.float32, -bound, bound)
        return w, b

    def bn(kg, kb, km, kv, d):
        gamma = jax.random.uniform(kg, (d,), jnp.float32, 0.8, 1.2)
        beta = jax.random.uniform(kb, (d,), jnp.float32, -0.1, 0.1)
        mean = jax.random.uniform(km, (d,), jnp.float32, -0.2, 0.2)
        var = jax.random.uniform(kv, (d,), jnp.float32, 0.5, 1.5)
        return gamma, beta, mean, var

    vis_w1, vis_b1 = lin(ks[0], ks[1], vis_dim, jemb_dim)
    vis_w2, vis_b2 = lin(ks[2], ks[3], jemb_dim, jemb_dim)
    lang_w1, lang_b1 = lin(ks[4], ks[5], lang_dim, jemb_dim)
    lang_w2, lang_b2 = lin(ks[6], ks[7], jemb_dim, jemb_dim)
    return {
        "vis_w1": vis_w1, "vis_b1": vis_b1,
        "vis_bn1": bn(ks[8], ks[9], ks[10], ks[11], jemb_dim),
        "vis_w2": vis_w2, "vis_b2": vis_b2,
        "vis_bn2": bn(ks[11], ks[10], ks[9], ks[8], jemb_dim),
        "lang_w1": lang_w1, "lang_b1": lang_b1,
        "lang_bn1": bn(ks[12], ks[13], ks[14], ks[15], jemb_dim),
        "lang_w2": lang_w2, "lang_b2": lang_b2,
        "lang_bn2": bn(ks[15], ks[14], ks[13], ks[12], jemb_dim),
    }


if __name__ == "__main__":
    key = jax.random.PRNGKey(0)
    k_vis, k_lang, k_par = jax.random.split(key, 3)

    N, VIS_DIM, LANG_DIM, JEMB_DIM = 8, 32, 24, 32
    visual_input = jax.random.normal(k_vis, (N, VIS_DIM), jnp.float32)
    lang_input = jax.random.normal(k_lang, (N, LANG_DIM), jnp.float32)
    params = make_params(k_par, VIS_DIM, LANG_DIM, JEMB_DIM)

    out = matching_forward(visual_input, lang_input, params)
    out = jax.block_until_ready(out)

    ref = matching_reference(visual_input, lang_input, params)
    assert out.shape == (N, 1)
    assert jnp.allclose(out, ref, atol=1e-4, rtol=1e-5), (out, ref)
    print("KERNEL_OK")
</pallas_src>

<mosaic_0001>
module attributes {stable_mosaic.version = 11 : i64} {
  func.func @_matching_kernel(%arg0: i32, %arg1: memref<8x56xf32, #tpu.memory_space<vmem>>, %arg2: memref<56x64xf32, #tpu.memory_space<vmem>>, %arg3: memref<1x64xf32, #tpu.memory_space<vmem>>, %arg4: memref<64x64xf32, #tpu.memory_space<vmem>>, %arg5: memref<1x64xf32, #tpu.memory_space<vmem>>, %arg6: memref<8x1xf32, #tpu.memory_space<vmem>>) attributes {dimension_semantics = [#tpu.dimension_semantics<parallel>], iteration_bounds = array<i64: 1>, scalar_prefetch = 0 : i64, scratch_operands = 0 : i64, tpu.core_type = #tpu.core_type<tc>, window_params = [{transform_indices = @transform_0, window_bounds = array<i64: 8, 56>}, {pipeline_mode = #tpu.pipeline_mode<synchronous>, transform_indices = @transform_1, window_bounds = array<i64: 56, 64>}, {pipeline_mode = #tpu.pipeline_mode<synchronous>, transform_indices = @transform_2, window_bounds = array<i64: 1, 64>}, {pipeline_mode = #tpu.pipeline_mode<synchronous>, transform_indices = @transform_3, window_bounds = array<i64: 64, 64>}, {pipeline_mode = #tpu.pipeline_mode<synchronous>, transform_indices = @transform_4, window_bounds = array<i64: 1, 64>}, {transform_indices = @transform_5, window_bounds = array<i64: 8, 1>}]} {
    %c0 = arith.constant 0 : index
    %c0_0 = arith.constant 0 : index
    %0 = vector.load %arg1[%c0, %c0_0] : memref<8x56xf32, #tpu.memory_space<vmem>>, vector<8x56xf32>
    %c0_1 = arith.constant 0 : index
    %c0_2 = arith.constant 0 : index
    %1 = vector.load %arg2[%c0_1, %c0_2] : memref<56x64xf32, #tpu.memory_space<vmem>>, vector<56x64xf32>
    %cst = arith.constant dense<0.000000e+00> : vector<8x64xf32>
    %2 = tpu.matmul %0, %1, %cst {dimension_numbers = #tpu.dot_dimension_numbers<[1], [0], [0], [1], [0, 0, 1, 1], [], []>} : vector<8x56xf32>, vector<56x64xf32>, vector<8x64xf32> -> vector<8x64xf32>
    %c0_3 = arith.constant 0 : index
    %c0_4 = arith.constant 0 : index
    %3 = vector.load %arg3[%c0_3, %c0_4] : memref<1x64xf32, #tpu.memory_space<vmem>>, vector<1x64xf32>
    %4 = vector.broadcast %3 : vector<1x64xf32> to vector<8x64xf32>
    %5 = arith.addf %2, %4 : vector<8x64xf32>
    %cst_5 = arith.constant 0.000000e+00 : f32
    %6 = vector.broadcast %cst_5 : f32 to vector<8x64xf32>
    %7 = arith.maximumf %5, %6 : vector<8x64xf32>
    %c0_6 = arith.constant 0 : index
    %c0_7 = arith.constant 0 : index
    %8 = vector.load %arg4[%c0_6, %c0_7] : memref<64x64xf32, #tpu.memory_space<vmem>>, vector<64x64xf32>
    %cst_8 = arith.constant dense<0.000000e+00> : vector<8x64xf32>
    %9 = tpu.matmul %7, %8, %cst_8 {dimension_numbers = #tpu.dot_dimension_numbers<[1], [0], [0], [1], [0, 0, 1, 1], [], []>} : vector<8x64xf32>, vector<64x64xf32>, vector<8x64xf32> -> vector<8x64xf32>
    %c0_9 = arith.constant 0 : index
    %c0_10 = arith.constant 0 : index
    %10 = vector.load %arg5[%c0_9, %c0_10] : memref<1x64xf32, #tpu.memory_space<vmem>>, vector<1x64xf32>
    %11 = vector.broadcast %10 : vector<1x64xf32> to vector<8x64xf32>
    %12 = arith.addf %9, %11 : vector<8x64xf32>
    %13 = vector.extract_strided_slice %12 {offsets = [0, 0], sizes = [8, 32], strides = [1, 1]} : vector<8x64xf32> to vector<8x32xf32>
    %14 = vector.extract_strided_slice %12 {offsets = [0, 32], sizes = [8, 32], strides = [1, 1]} : vector<8x64xf32> to vector<8x32xf32>
    %15 = arith.mulf %13, %14 : vector<8x32xf32>
    %cst_11 = arith.constant dense<0.000000e+00> : vector<8xf32>
    %16 = vector.multi_reduction <add>, %15, %cst_11 [1] : vector<8x32xf32> to vector<8xf32>
    %17 = vector.shape_cast %16 : vector<8xf32> to vector<8x1xf32>
    %18 = arith.mulf %13, %13 : vector<8x32xf32>
    %cst_12 = arith.constant dense<0.000000e+00> : vector<8xf32>
    %19 = vector.multi_reduction <add>, %18, %cst_12 [1] : vector<8x32xf32> to vector<8xf32>
    %20 = vector.shape_cast %19 : vector<8xf32> to vector<8x1xf32>
    %21 = math.sqrt %20 : vector<8x1xf32>
    %22 = arith.mulf %14, %14 : vector<8x32xf32>
    %cst_13 = arith.constant dense<0.000000e+00> : vector<8xf32>
    %23 = vector.multi_reduction <add>, %22, %cst_13 [1] : vector<8x32xf32> to vector<8xf32>
    %24 = vector.shape_cast %23 : vector<8xf32> to vector<8x1xf32>
    %25 = math.sqrt %24 : vector<8x1xf32>
    %cst_14 = arith.constant 9.99999996E-13 : f32
    %26 = vector.broadcast %cst_14 : f32 to vector<8x1xf32>
    %27 = arith.maximumf %21, %26 : vector<8x1xf32>
    %cst_15 = arith.constant 9.99999996E-13 : f32
    %28 = vector.broadcast %cst_15 : f32 to vector<8x1xf32>
    %29 = arith.maximumf %25, %28 : vector<8x1xf32>
    %30 = arith.mulf %27, %29 : vector<8x1xf32>
    %31 = arith.divf %17, %30 : vector<8x1xf32>
    %c0_16 = arith.constant 0 : index
    %c0_17 = arith.constant 0 : index
    %32 = vector.load %arg6[%c0_16, %c0_17] : memref<8x1xf32, #tpu.memory_space<vmem>>, vector<8x1xf32>
    tpu.vector_store %arg6[%c0_16, %c0_17], %31 {strides = array<i32>} : memref<8x1xf32, #tpu.memory_space<vmem>>, vector<8x1xf32>,
    return
  }
  func.func @transform_0(%arg0: i32) -> (i32, i32) {
    %c0_i32 = arith.constant 0 : i32
    %c0_i32_0 = arith.constant 0 : i32
    return %arg0, %c0_i32 : i32, i32
  }
  func.func @transform_1(%arg0: i32) -> (i32, i32) {
    %c0_i32 = arith.constant 0 : i32
    %c0_i32_0 = arith.constant 0 : i32
    %c0_i32_1 = arith.constant 0 : i32
    return %c0_i32, %c0_i32_0 : i32, i32
  }
  func.func @transform_2(%arg0: i32) -> (i32, i32) {
    %c0_i32 = arith.constant 0 : i32
    %c0_i32_0 = arith.constant 0 : i32
    %c0_i32_1 = arith.constant 0 : i32
    return %c0_i32, %c0_i32_0 : i32, i32
  }
  func.func @transform_3(%arg0: i32) -> (i32, i32) {
    %c0_i32 = arith.constant 0 : i32
    %c0_i32_0 = arith.constant 0 : i32
    %c0_i32_1 = arith.constant 0 : i32
    return %c0_i32, %c0_i32_0 : i32, i32
  }
  func.func @transform_4(%arg0: i32) -> (i32, i32) {
    %c0_i32 = arith.constant 0 : i32
    %c0_i32_0 = arith.constant 0 : i32
    %c0_i32_1 = arith.constant 0 : i32
    return %c0_i32, %c0_i32_0 : i32, i32
  }
  func.func @transform_5(%arg0: i32) -> (i32, i32) {
    %c0_i32 = arith.constant 0 : i32
    %c0_i32_0 = arith.constant 0 : i32
    return %arg0, %c0_i32 : i32, i32
  }
}

</mosaic_0001>

<llo_original>
// kernel: tpu_custom_call.1
$region0: #{tpu_custom_call.1}
  #allocation0 [shape = 'u32[]', space=smem, size = 0x4, offset = 0x4, fixed_abs, tag = 'smem constant byte address 0x4 - core index']
  #allocation1 [shape = 'u32[144,128]{1,0:T(1,128)}', space=vmem, size = 0x12000, scoped, tag = 'internal scratch']
  %s0 = inlined_call_operand.hbm [shape: f32[8,56], index: 0, kind: input, shape index: {}]
  %s1 = inlined_call_operand.hbm [shape: f32[56,64], index: 1, kind: input, shape index: {}]
  %s2 = inlined_call_operand.vmem [shape: f32[1,64], index: 2, kind: input, shape index: {}]
  %s3 = inlined_call_operand.hbm [shape: f32[64,64], index: 3, kind: input, shape index: {}]
  %s4 = inlined_call_operand.vmem [shape: f32[1,64], index: 4, kind: input, shape index: {}]
  %s5 = inlined_call_operand.vmem [shape: f32[8,1], index: 5, kind: output, shape index: {}]
  %s6 = sld [smem:[#allocation0]]
  $region42: #{tpu_custom_call.1} parent=0
    _
  %s8 = ssub.s32 1, %s6
  %s9 = scalar_select 0, %s8, %s6
  $region1: #{tpu_custom_call.1} parent=0
    #allocation2 [shape = 'u8[4096]{0}', space=vmem, size = 0x1000, scoped, tag = 'input window, operand 0, single buffered']
    #allocation3 [shape = 's32[1]{0}', space=sflag, size = 0x4, scoped, tag = 'scoped memory for tpu_custom_call.1']
    #allocation4 [shape = 'u8[28672]{0}', space=vmem, size = 0x7000, scoped, tag = 'input window, operand 1, single buffered']
    #allocation5 [shape = 's32[1]{0}', space=sflag, size = 0x4, scoped, tag = 'scoped memory for tpu_custom_call.1']
    #allocation6 [shape = 'u8[32768]{0}', space=vmem, size = 0x8000, scoped, tag = 'input window, operand 3, single buffered']
    %10 = vsyncpa [#allocation3], 0
    %11 = vsyncpa [#allocation5], 0
    // Predicated region
    $region2: #{tpu_custom_call.1} parent=1 // pred_check
      _
    $region3: #{tpu_custom_call.1} parent=1 // pred_check_branch
      %13 = sbr.rel (0) target = $region5
    $region4: #{tpu_custom_call.1} parent=1 // pred_region
      %s15 = ssub.s32 128, 128
      %16 = vsyncadd [#allocation3], %s15
      %s18 = sshll.u32 [#allocation2], 4
      %s19 = int_to_ptr.vmem [resolvable:$true] %s18
      %21 = dma.hbm_to_vmem [thread:$0]  %s0, 128, %s19, [#allocation3]
    $region5: #{tpu_custom_call.1} parent=1 // pred_fallthru
      _
    // Predicated region
    $region6: #{tpu_custom_call.1} parent=1 // pred_check
      _
    $region7: #{tpu_custom_call.1} parent=1 // pred_check_branch
      %23 = sbr.rel (0) target = $region9
    $region8: #{tpu_custom_call.1} parent=1 // pred_region
      %s25 = ssub.s32 896, 896
      %26 = vsyncadd [#allocation5], %s25
      %s27 = sshll.u32 [#allocation4], 4
      %s28 = int_to_ptr.vmem [resolvable:$true] %s27
      %33 = dma.hbm_to_vmem [thread:$0]  %s1, 896, %s28, [#allocation5], 128, 128, 8
    $region9: #{tpu_custom_call.1} parent=1 // pred_fallthru
      _
    // Predicated region
    $region10: #{tpu_custom_call.1} parent=1 // pred_check
      _
    $region11: #{tpu_custom_call.1} parent=1 // pred_check_branch
      %35 = sbr.rel (0) target = $region13
    $region12: #{tpu_custom_call.1} parent=1 // pred_region
      _
    $region13: #{tpu_custom_call.1} parent=1 // pred_fallthru
      _
    // Predicated region
    $region14: #{tpu_custom_call.1} parent=1 // pred_check
      _
    $region15: #{tpu_custom_call.1} parent=1 // pred_check_branch
      %37 = sbr.rel (0) target = $region17
    $region16: #{tpu_custom_call.1} parent=1 // pred_region
      %s39 = ssub.s32 1024, 1024
      %40 = vsyncadd [#allocation5], %s39
      %s41 = sshll.u32 [#allocation6], 4
      %s42 = int_to_ptr.vmem [resolvable:$true] %s41
      %47 = dma.hbm_to_vmem [thread:$0]  %s3, 1024, %s42, [#allocation5], 128, 128, 8
    $region17: #{tpu_custom_call.1} parent=1 // pred_fallthru
      _
    // Predicated region
    $region18: #{tpu_custom_call.1} parent=1 // pred_check
      _
    $region19: #{tpu_custom_call.1} parent=1 // pred_check_branch
      %49 = sbr.rel (0) target = $region21
    $region20: #{tpu_custom_call.1} parent=1 // pred_region
      _
    $region21: #{tpu_custom_call.1} parent=1 // pred_fallthru
      _
    // Predicated region
    $region22: #{tpu_custom_call.1} parent=1 // pred_check
      _
    $region23: #{tpu_custom_call.1} parent=1 // pred_check_branch
      %51 = sbr.rel (0) target = $region25
    $region24: #{tpu_custom_call.1} parent=1 // pred_region
      %52 = dma.done [#allocation3], 128
    $region25: #{tpu_custom_call.1} parent=1 // pred_fallthru
      _
    // Predicated region
    $region26: #{tpu_custom_call.1} parent=1 // pred_check
      _
    $region27: #{tpu_custom_call.1} parent=1 // pred_check_branch
      %54 = sbr.rel (0) target = $region29
    $region28: #{tpu_custom_call.1} parent=1 // pred_region
      %55 = dma.done [#allocation5], 896
    $region29: #{tpu_custom_call.1} parent=1 // pred_fallthru
      _
    // Predicated region
    $region30: #{tpu_custom_call.1} parent=1 // pred_check
      _
    $region31: #{tpu_custom_call.1} parent=1 // pred_check_branch
      %57 = sbr.rel (0) target = $region33
    $region32: #{tpu_custom_call.1} parent=1 // pred_region
      %58 = dma.done [#allocation5], 1024
    $region33: #{tpu_custom_call.1} parent=1 // pred_fallthru
      _
    %v59 = vld [vmem:[#allocation2] sm:$0xff]
    %v60 = vld [vmem:[#allocation4] sm:$0xff]
    %v61 = vld [vmem:[#allocation4 + $0x8] sm:$0xff]
    %v62 = vld [vmem:[#allocation4 + $0x10] sm:$0xff]
    %v63 = vld [vmem:[#allocation4 + $0x18] sm:$0xff]
    %v64 = vld [vmem:[#allocation4 + $0x20] sm:$0xff]
    %v65 = vld [vmem:[#allocation4 + $0x28] sm:$0xff]
    %v66 = vld [vmem:[#allocation4 + $0x30] sm:$0xff]
    %v67 = vld [vmem:[%s2] sm:$0x1]
    %v69 = vlaneseq
    %v70 = vshrl.u32 %v69, 7
    %v71 = vsub.s32 0, %v70
    %v72 = vrot.slane %v67, %v71
    %vm74 = vcmask 457728
    %v76 = vsel %vm74, %v59, 0
    %78 = vmatprep.subr.mxu0 0.0
    %79 = vmatpush1.msra.mxu0 %v60
    %80 = vmatprep.subr.mxu0 0.0
    %81 = vmatpush1.msra.mxu0 %v61
    %82 = vmatprep.subr.mxu0 0.0
    %83 = vmatpush1.msra.mxu0 %v62
    %84 = vmatprep.subr.mxu0 0.0
    %85 = vmatpush1.msra.mxu0 %v63
    %86 = vmatprep.subr.mxu0 0.0
    %87 = vmatpush1.msra.mxu0 %v64
    %88 = vmatprep.subr.mxu0 0.0
    %89 = vmatpush1.msra.mxu0 %v65
    %90 = vmatprep.subr.mxu0 0.0
    %91 = vmatpush1.msra.mxu0 %v66
    %92 = vmatprep.subr.mxu0 0.0
    %93 = vmatpush1.msra.mxu0 0.0
    %94 = vmatprep.subr.mxu0 0.0
    %95 = vmatpush1.msra.mxu0 0.0
    %96 = vmatprep.subr.mxu0 0.0
    %97 = vmatpush1.msra.mxu0 0.0
    %98 = vmatprep.subr.mxu0 0.0
    %99 = vmatpush1.msra.mxu0 0.0
    %100 = vmatprep.subr.mxu0 0.0
    %101 = vmatpush1.msra.mxu0 0.0
    %102 = vmatprep.subr.mxu0 0.0
    %103 = vmatpush1.msra.mxu0 0.0
    %104 = vmatprep.subr.mxu0 0.0
    %105 = vmatpush1.msra.mxu0 0.0
    %106 = vmatprep.subr.mxu0 0.0
    %107 = vmatpush1.msra.mxu0 0.0
    %108 = vmatprep.subr.mxu0 0.0
    %109 = vmatpush1.msra.mxu0 0.0
    %110 = vmatprep.subr.mxu0 0.0
    %111 = vmatpush1.msra.mxu0 0.0
    %112 = vmatprep.subr.mxu0 0.0
    %113 = vmatpush1.msra.mxu0 0.0
    %114 = vmatprep.subr.mxu0 0.0
    %115 = vmatpush1.msra.mxu0 0.0
    %116 = vmatprep.subr.mxu0 0.0
    %117 = vmatpush1.msra.mxu0 0.0
    %118 = vmatprep.subr.mxu0 0.0
    %119 = vmatpush1.msra.mxu0 0.0
    %120 = vmatprep.subr.mxu0 0.0
    %121 = vmatpush1.msra.mxu0 0.0
    %122 = vmatprep.subr.mxu0 0.0
    %123 = vmatpush1.msra.mxu0 0.0
    %124 = vmatprep.subr.mxu0 0.0
    %125 = vmatpush1.msra.mxu0 0.0
    %126 = vmatprep.subr.mxu0 0.0
    %127 = vmatpush1.msra.mxu0 0.0
    %128 = vmatprep.subr.mxu0 0.0
    %129 = vmatpush1.msra.mxu0 0.0
    %130 = vmatprep.subr.mxu0 0.0
    %131 = vmatpush1.msra.mxu0 0.0
    %132 = vmatprep.subr.mxu0 0.0
    %133 = vmatpush1.msra.mxu0 0.0
    %134 = vmatprep.subr.mxu0 0.0
    %135 = vmatpush1.msra.mxu0 0.0
    %136 = vmatprep.subr.mxu0 0.0
    %137 = vmatpush1.msra.mxu0 0.0
    %138 = vmatprep.subr.mxu0 0.0
    %139 = vmatpush1.msra.mxu0 0.0
    %140 = vmatprep.subr.mxu0 0.0
    %141 = vmatpush1.msra.mxu0 0.0
    %142 = vmatprep.mubr.f32.mxu0 0.0
    %143 = vmatmul.mubr.f32.gmra.mrb[0].mxu0 %v76
    %v144 = vpop.f32.mrb[0].mxu0
    %v145 = vadd.f32 %v72, %v144
    %v146 = vpop.f32.mrb[0].mxu0
    %147 = vdwg.mxu0
    %v148 = vmax.f32 %v145, 0.0
    %v149 = vld [vmem:[#allocation6] sm:$0xff]
    %v150 = vld [vmem:[#allocation6 + $0x8] sm:$0xff]
    %v151 = vld [vmem:[#allocation6 + $0x10] sm:$0xff]
    %v152 = vld [vmem:[#allocation6 + $0x18] sm:$0xff]
    %v153 = vld [vmem:[#allocation6 + $0x20] sm:$0xff]
    %v154 = vld [vmem:[#allocation6 + $0x28] sm:$0xff]
    %v155 = vld [vmem:[#allocation6 + $0x30] sm:$0xff]
    %v156 = vld [vmem:[#allocation6 + $0x38] sm:$0xff]
    %v157 = vld [vmem:[%s4] sm:$0x1]
    %v159 = vlaneseq
    %v160 = vshrl.u32 %v159, 7
    %v161 = vsub.s32 0, %v160
    %v162 = vrot.slane %v157, %v161
    %vm164 = vcmask 523264
    %v166 = vsel %vm164, %v148, 0
    %168 = vmatprep.subr.mxu0 0.0
    %169 = vmatpush1.msra.mxu0 %v149
    %170 = vmatprep.subr.mxu0 0.0
    %171 = vmatpush1.msra.mxu0 %v150
    %172 = vmatprep.subr.mxu0 0.0
    %173 = vmatpush1.msra.mxu0 %v151
    %174 = vmatprep.subr.mxu0 0.0
    %175 = vmatpush1.msra.mxu0 %v152
    %176 = vmatprep.subr.mxu0 0.0
    %177 = vmatpush1.msra.mxu0 %v153
    %178 = vmatprep.subr.mxu0 0.0
    %179 = vmatpush1.msra.mxu0 %v154
    %180 = vmatprep.subr.mxu0 0.0
    %181 = vmatpush1.msra.mxu0 %v155
    %182 = vmatprep.subr.mxu0 0.0
    %183 = vmatpush1.msra.mxu0 %v156
    %184 = vmatprep.subr.mxu0 0.0
    %185 = vmatpush1.msra.mxu0 0.0
    %186 = vmatprep.subr.mxu0 0.0
    %187 = vmatpush1.msra.mxu0 0.0
    %188 = vmatprep.subr.mxu0 0.0
    %189 = vmatpush1.msra.mxu0 0.0
    %190 = vmatprep.subr.mxu0 0.0
    %191 = vmatpush1.msra.mxu0 0.0
    %192 = vmatprep.subr.mxu0 0.0
    %193 = vmatpush1.msra.mxu0 0.0
    %194 = vmatprep.subr.mxu0 0.0
    %195 = vmatpush1.msra.mxu0 0.0
    %196 = vmatprep.subr.mxu0 0.0
    %197 = vmatpush1.msra.mxu0 0.0
    %198 = vmatprep.subr.mxu0 0.0
    %199 = vmatpush1.msra.mxu0 0.0
    %200 = vmatprep.subr.mxu0 0.0
    %201 = vmatpush1.msra.mxu0 0.0
    %202 = vmatprep.subr.mxu0 0.0
    %203 = vmatpush1.msra.mxu0 0.0
    %204 = vmatprep.subr.mxu0 0.0
    %205 = vmatpush1.msra.mxu0 0.0
    %206 = vmatprep.subr.mxu0 0.0
    %207 = vmatpush1.msra.mxu0 0.0
    %208 = vmatprep.subr.mxu0 0.0
    %209 = vmatpush1.msra.mxu0 0.0
    %210 = vmatprep.subr.mxu0 0.0
    %211 = vmatpush1.msra.mxu0 0.0
    %212 = vmatprep.subr.mxu0 0.0
    %213 = vmatpush1.msra.mxu0 0.0
    %214 = vmatprep.subr.mxu0 0.0
    %215 = vmatpush1.msra.mxu0 0.0
    %216 = vmatprep.subr.mxu0 0.0
    %217 = vmatpush1.msra.mxu0 0.0
    %218 = vmatprep.subr.mxu0 0.0
    %219 = vmatpush1.msra.mxu0 0.0
    %220 = vmatprep.subr.mxu0 0.0
    %221 = vmatpush1.msra.mxu0 0.0
    %222 = vmatprep.subr.mxu0 0.0
    %223 = vmatpush1.msra.mxu0 0.0
    %224 = vmatprep.subr.mxu0 0.0
    %225 = vmatpush1.msra.mxu0 0.0
    %226 = vmatprep.subr.mxu0 0.0
    %227 = vmatpush1.msra.mxu0 0.0
    %228 = vmatprep.subr.mxu0 0.0
    %229 = vmatpush1.msra.mxu0 0.0
    %230 = vmatprep.subr.mxu0 0.0
    %231 = vmatpush1.msra.mxu0 0.0
    %232 = vmatprep.mubr.f32.mxu0 0.0
    %233 = vmatmul.mubr.f32.gmra.mrb[0].mxu0 %v166
    %v234 = vpop.f32.mrb[0].mxu0
    %v235 = vadd.f32 %v162, %v234
    %v236 = vpop.f32.mrb[0].mxu0
    %237 = vdwg.mxu0
    %239 = vrot.lane.b32.xlu0 %v235, 96
    %v240 = vpop.permute.xlu0 %239
    %v242 = vmul.f32 %v235, %v240
    %vm243 = vcmask 261120
    %v244 = vsel %vm243, %v242, 0.0
    %245 = vadd.xlane.f32.xlu0 %v244
    %v246 = vpop.xlane.xlu0 %245
    %v247 = vmul.f32 %v235, %v235
    %v248 = vsel %vm243, %v247, 0.0
    %249 = vadd.xlane.f32.xlu0 %v248
    %v250 = vpop.xlane.xlu0 %249
    %v251 = vrsqrt.pop %v250
    %v252 = vmul.f32 %v250, %v251
    %vm253 = vcmp.eq.f32.partialorder %v250, inf
    %v254 = vsel %vm253, %v250, %v252
    %vm255 = vcmp.eq.f32.partialorder %v250, 0.0
    %v256 = vand.u32 %v250, 2147483648
    %v257 = vsel %vm255, %v256, %v254
    %259 = vrot.lane.b32.xlu0 %v247, 96
    %v260 = vpop.permute.xlu0 %259
    %v262 = vsel %vm243, %v260, 0.0
    %263 = vadd.xlane.f32.xlu0 %v262
    %v264 = vpop.xlane.xlu0 %263
    %v265 = vrsqrt.pop %v264
    %v266 = vmul.f32 %v264, %v265
    %vm267 = vcmp.eq.f32.partialorder %v264, inf
    %v268 = vsel %vm267, %v264, %v266
    %vm269 = vcmp.eq.f32.partialorder %v264, 0.0
    %v270 = vand.u32 %v264, 2147483648
    %v271 = vsel %vm269, %v270, %v268
    %v272 = vmax.f32 %v257, 1e-12
    %v273 = vmax.f32 %v271, 1e-12
    %v274 = vmul.f32 %v272, %v273
    %v275 = vrcp.pop %v274
    %v276 = vmul.f32 %v246, %v275
    %vm277 = vcmask 7168
    %278 = vst.msk [vmem:[%s5] sm:$0xff] %vm277, %v276
    // Predicated region
    $region34: #{tpu_custom_call.1} parent=1 // pred_check
      _
    $region35: #{tpu_custom_call.1} parent=1 // pred_check_branch
      %280 = sbr.rel (0) target = $region37
    $region36: #{tpu_custom_call.1} parent=1 // pred_region
      _
    $region37: #{tpu_custom_call.1} parent=1 // pred_fallthru
      _
    // Predicated region
    $region38: #{tpu_custom_call.1} parent=1 // pred_check
      _
    $region39: #{tpu_custom_call.1} parent=1 // pred_check_branch
      %282 = sbr.rel (0) target = $region41
    $region40: #{tpu_custom_call.1} parent=1 // pred_region
      _
    $region41: #{tpu_custom_call.1} parent=1 // pred_fallthru
      _
    %283 = vsyncpa [#allocation3], 1
    %284 = vsyncpa [#allocation5], 1

</llo_original>
